<compile_context>
chip_gen: v6e
topology: v6e:2x2x1
jax: 0.10.0
libtpu: 0.0.40
codegen_flags: <defaults>
</compile_context>

<pallas_src>
import functools

import jax
import jax.numpy as jnp
from jax.experimental import pallas as pl
from jax.experimental.pallas import tpu as pltpu


# ----------------------------------------------------------------------------
# Kernels
# ----------------------------------------------------------------------------
def _scse_fused_kernel(x_ref, w1t_ref, b1_ref, w2_ref, b2_ref, ws_ref, bs_ref,
                       o_ref, *, inv_hw):
    """Single-pass SCSE over a block of `nb` whole images.

    x_ref/o_ref: (nb, C, HWp); w1t: (C, Cr); b1: (1, Cr); w2: (C, Cr);
    b2: (C, 1); ws: (C, 1); bs: (1, 1). inv_hw = 1 / (true H*W).
    """
    x = x_ref[...].astype(jnp.float32)                               # (nb, C, HW)

    # ---- channel SE: global average pool -> 1x1 conv -> ReLU -> 1x1 conv ----
    # Tiny MLP kept off the MXU: broadcast-multiply + lane/sublane reductions
    # (layout-clean, no reshapes/transposes, VPU+XLU slots are idle anyway).
    mean_c = jnp.sum(x, axis=-1, keepdims=True) * inv_hw             # (nb, C, 1)
    h = jnp.maximum(
        jnp.sum(w1t_ref[...][None] * mean_c, axis=1, keepdims=True)
        + b1_ref[...][None], 0.0)                                    # (nb, 1, Cr)
    g_c = jax.nn.sigmoid(
        jnp.sum(w2_ref[...][None] * h, axis=-1, keepdims=True)
        + b2_ref[...][None])                                         # (nb, C, 1)

    # ---- spatial SE: 1x1 conv across channels -> sigmoid --------------------
    g_s = jax.nn.sigmoid(
        jnp.sum(x * ws_ref[...][None], axis=1, keepdims=True)
        + bs_ref[...][None])                                         # (nb, 1, HW)

    # x*cSE + x*sSE = x * (cSE + sSE)
    o_ref[...] = (x * (g_c + g_s)).astype(o_ref.dtype)


def _scse_gate_kernel(x_ref, w1t_ref, b1_ref, w2_ref, b2_ref, g_ref, sum_ref,
                      *, inv_hw):
    """Two-pass path, pass 1: per-image channel mean (accumulated over HW
    tiles) + cSE MLP -> g_c of shape (1, C, 1) per image."""
    j = pl.program_id(1)

    @pl.when(j == 0)
    def _():
        sum_ref[...] = jnp.zeros_like(sum_ref)

    sum_ref[...] += jnp.sum(x_ref[0].astype(jnp.float32), axis=-1, keepdims=True)

    @pl.when(j == pl.num_programs(1) - 1)
    def _():
        mean_c = sum_ref[...] * inv_hw                               # (C, 1)
        h = jnp.maximum(
            jnp.sum(w1t_ref[...] * mean_c, axis=0, keepdims=True)
            + b1_ref[...], 0.0)                                      # (1, Cr)
        g_ref[0] = jax.nn.sigmoid(
            jnp.sum(w2_ref[...] * h, axis=-1, keepdims=True)
            + b2_ref[...])                                           # (C, 1)


def _scse_apply_kernel(x_ref, g_ref, ws_ref, bs_ref, o_ref):
    """Two-pass path, pass 2: apply precomputed channel gate + per-pixel sSE
    gate on a (1, C, hw_tile) block."""
    x = x_ref[...].astype(jnp.float32)                               # (1, C, hw)
    g_s = jax.nn.sigmoid(
        jnp.sum(x * ws_ref[...][None], axis=1, keepdims=True)
        + bs_ref[...][None])                                         # (1, 1, hw)
    o_ref[...] = (x * (g_ref[...] + g_s)).astype(o_ref.dtype)


# ----------------------------------------------------------------------------
# Wrapper
# ----------------------------------------------------------------------------
def scse_forward(x_nchw, params, *, io_dtype=None, force_two_pass=False,
                 fused_max_img_bytes=4 * 1024 * 1024,
                 block_target_bytes=2 * 1024 * 1024):
    """x_nchw: (N, C, H, W). params: dict of SCSE weights (see build_params).

    io_dtype: dtype used for the streamed x / out HBM traffic (e.g. bf16 halves
    HBM bytes and VMEM footprint on v6e/v7x); gate math always stays f32.
    """
    n, c, h, w = x_nchw.shape
    hw_true = h * w
    hw_pad = ((hw_true + 127) // 128) * 128                # lane-dense last dim
    io_dtype = jnp.dtype(io_dtype) if io_dtype is not None else x_nchw.dtype
    itemsize = jnp.dtype(io_dtype).itemsize

    x = x_nchw.reshape(n, c, hw_true).astype(io_dtype)     # free row-major reshape
    if hw_pad != hw_true:
        x = jnp.pad(x, ((0, 0), (0, 0), (0, hw_pad - hw_true)))  # zeros: mean-safe

    cr = params["w1"].shape[0]
    # Weight layout prep (tiny, done once per call): everything f32.
    w1t = params["w1"].T.astype(jnp.float32)               # (C, Cr)
    b1r = params["b1"].reshape(1, cr).astype(jnp.float32)  # (1, Cr)
    w2 = params["w2"].astype(jnp.float32)                  # (C, Cr)
    b2c = params["b2"].astype(jnp.float32)                 # (C, 1)
    wsc = params["ws"].reshape(c, 1).astype(jnp.float32)   # (C, 1)
    bs = params["bs"].astype(jnp.float32)                  # (1, 1)

    inv_hw = 1.0 / float(hw_true)
    img_bytes = c * hw_pad * itemsize

    if (not force_two_pass) and img_bytes <= fused_max_img_bytes:
        # ------------------ fused single-pass path (small images) ------------
        # Block several images per grid step to amortize the ~0.35us/step
        # overhead, but keep the grid >= 2 so v7x megacore can still shard.
        nb = 1
        for cand in range(n, 0, -1):
            if n % cand:
                continue
            if cand * img_bytes > max(block_target_bytes, img_bytes):
                continue
            if n >= 2 and n // cand < 2:
                continue
            nb = cand
            break
        block_io = nb * img_bytes
        block_f32 = nb * c * hw_pad * 4
        vmem_limit = int(min(max(4 * block_io + 6 * block_f32 + (8 << 20),
                                 32 << 20), 48 << 20))

        out = pl.pallas_call(
            functools.partial(_scse_fused_kernel, inv_hw=inv_hw),
            out_shape=jax.ShapeDtypeStruct((n, c, hw_pad), io_dtype),
            grid=(n // nb,),
            in_specs=[
                pl.BlockSpec((nb, c, hw_pad), lambda i: (i, 0, 0)),   # x
                pl.BlockSpec((c, cr), lambda i: (0, 0)),              # w1^T
                pl.BlockSpec((1, cr), lambda i: (0, 0)),              # b1
                pl.BlockSpec((c, cr), lambda i: (0, 0)),              # w2
                pl.BlockSpec((c, 1), lambda i: (0, 0)),               # b2
                pl.BlockSpec((c, 1), lambda i: (0, 0)),               # ws
                pl.BlockSpec((1, 1), lambda i: (0, 0)),               # bs
            ],
            out_specs=pl.BlockSpec((nb, c, hw_pad), lambda i: (i, 0, 0)),
            input_output_aliases={0: 0},                   # donate x's HBM buffer
            compiler_params=pltpu.CompilerParams(
                dimension_semantics=("parallel",),
                vmem_limit_bytes=vmem_limit),
        )(x, w1t, b1r, w2, b2c, wsc, bs)
    else:
        # ------------------ two-pass spatially tiled path (large images) -----
        # hw_tile: largest multiple of 128 dividing hw_pad with C*hw_tile*itemsize
        # <= block_target_bytes (bounds VMEM independent of image size -> v7x-safe).
        max_lanes = max(128, (block_target_bytes // max(c * itemsize, 1)) // 128 * 128)
        hw_tile = 128
        for cand in range(min(max_lanes, hw_pad), 127, -128):
            if hw_pad % cand == 0:
                hw_tile = cand
                break
        n_tiles = hw_pad // hw_tile
        tile_io = c * hw_tile * itemsize
        tile_f32 = c * hw_tile * 4
        vmem_limit = int(min(max(4 * tile_io + 6 * tile_f32 + (8 << 20),
                                 32 << 20), 48 << 20))

        # Pass 1: per-image channel mean + cSE MLP -> g_c (N, C, 1).
        g_c = pl.pallas_call(
            functools.partial(_scse_gate_kernel, inv_hw=inv_hw),
            out_shape=jax.ShapeDtypeStruct((n, c, 1), jnp.float32),
            grid=(n, n_tiles),
            in_specs=[
                pl.BlockSpec((1, c, hw_tile), lambda i, j: (i, 0, j)),  # x tile
                pl.BlockSpec((c, cr), lambda i, j: (0, 0)),             # w1^T
                pl.BlockSpec((1, cr), lambda i, j: (0, 0)),             # b1
                pl.BlockSpec((c, cr), lambda i, j: (0, 0)),             # w2
                pl.BlockSpec((c, 1), lambda i, j: (0, 0)),              # b2
            ],
            out_specs=pl.BlockSpec((1, c, 1), lambda i, j: (i, 0, 0)),
            scratch_shapes=[pltpu.VMEM((c, 1), jnp.float32)],
            compiler_params=pltpu.CompilerParams(
                dimension_semantics=("parallel", "arbitrary"),
                vmem_limit_bytes=vmem_limit),
        )(x, w1t, b1r, w2, b2c)

        # Pass 2: stream x in lane-dense tiles, apply (g_c + sSE) gate.
        out = pl.pallas_call(
            _scse_apply_kernel,
            out_shape=jax.ShapeDtypeStruct((n, c, hw_pad), io_dtype),
            grid=(n, n_tiles),
            in_specs=[
                pl.BlockSpec((1, c, hw_tile), lambda i, j: (i, 0, j)),  # x tile
                pl.BlockSpec((1, c, 1), lambda i, j: (i, 0, 0)),        # g_c
                pl.BlockSpec((c, 1), lambda i, j: (0, 0)),              # ws
                pl.BlockSpec((1, 1), lambda i, j: (0, 0)),              # bs
            ],
            out_specs=pl.BlockSpec((1, c, hw_tile), lambda i, j: (i, 0, j)),
            input_output_aliases={0: 0},
            compiler_params=pltpu.CompilerParams(
                dimension_semantics=("parallel", "parallel"),
                vmem_limit_bytes=vmem_limit),
        )(x, g_c, wsc, bs)

    if hw_pad != hw_true:
        out = out[:, :, :hw_true]
    return out.reshape(n, c, h, w)


# ----------------------------------------------------------------------------
# Pure-JAX reference (mirrors the PyTorch module exactly)
# ----------------------------------------------------------------------------
def scse_reference(x, p):
    mean = x.mean(axis=(2, 3))                                     # AdaptiveAvgPool2d(1)
    hid = jnp.maximum(mean @ p["w1"].T + p["b1"][:, 0], 0.0)       # Conv1x1 + ReLU
    g_c = jax.nn.sigmoid(hid @ p["w2"].T + p["b2"][:, 0])          # Conv1x1 + Sigmoid
    g_s = jax.nn.sigmoid(
        jnp.einsum("nchw,kc->nkhw", x, p["ws"]) + p["bs"][0, 0])   # Conv1x1 + Sigmoid
    return x * g_c[:, :, None, None] + x * g_s


# ----------------------------------------------------------------------------
# Deterministic parameter construction (Conv2d 1x1 weights, squeezed)
# ----------------------------------------------------------------------------
def build_params(key, in_channels, reduction=16):
    c, cr = in_channels, max(in_channels // reduction, 1)
    k1, k2, k3, k4, k5, k6 = jax.random.split(key, 6)
    return {
        "w1": 0.2 * jax.random.normal(k1, (cr, c), jnp.float32),   # Conv2d(C, C//r, 1)
        "b1": 0.1 * jax.random.normal(k2, (cr, 1), jnp.float32),
        "w2": 0.2 * jax.random.normal(k3, (c, cr), jnp.float32),   # Conv2d(C//r, C, 1)
        "b2": 0.1 * jax.random.normal(k4, (c, 1), jnp.float32),
        "ws": 0.2 * jax.random.normal(k5, (1, c), jnp.float32),    # Conv2d(C, 1, 1)
        "bs": 0.1 * jax.random.normal(k6, (1, 1), jnp.float32),
    }


# ----------------------------------------------------------------------------
# Main
# ----------------------------------------------------------------------------
if __name__ == "__main__":
    key = jax.random.PRNGKey(0)
    key, kp, kx1, kx2, kx3 = jax.random.split(key, 5)

    # 1) Small shape, fused single-pass path (f32).
    batch, channels, spatial, reduction = 2, 64, 16, 16
    params = build_params(kp, channels, reduction)
    x1 = jax.random.normal(kx1, (batch, channels, spatial, spatial), jnp.float32)
    fwd = jax.jit(functools.partial(scse_forward, params=params))
    out1 = jax.block_until_ready(fwd(x1))
    assert out1.shape == x1.shape
    assert bool(jnp.all(jnp.isfinite(out1)))
    ref1 = scse_reference(x1, params)
    assert bool(jnp.allclose(out1, ref1, rtol=1e-4, atol=1e-4)), \
        float(jnp.max(jnp.abs(out1 - ref1)))

    # 2) H*W not a multiple of 128 (14x14) -> lane-padding path.
    params2 = build_params(kp, 32, reduction)
    x2 = jax.random.normal(kx2, (2, 32, 14, 14), jnp.float32)
    out2 = jax.block_until_ready(
        jax.jit(functools.partial(scse_forward, params=params2))(x2))
    ref2 = scse_reference(x2, params2)
    assert bool(jnp.allclose(out2, ref2, rtol=1e-4, atol=1e-4)), \
        float(jnp.max(jnp.abs(out2 - ref2)))

    # 3) Forced two-pass spatially tiled path (the large-image / v7x variant).
    x3 = jax.random.normal(kx3, (2, channels, 32, 32), jnp.float32)
    fwd3 = jax.jit(functools.partial(scse_forward, params=params,
                                     force_two_pass=True,
                                     block_target_bytes=64 * 1024))
    out3 = jax.block_until_ready(fwd3(x3))
    ref3 = scse_reference(x3, params)
    assert bool(jnp.allclose(out3, ref3, rtol=1e-4, atol=1e-4)), \
        float(jnp.max(jnp.abs(out3 - ref3)))

    # 4) bf16 I/O variant (gate math stays f32).
    fwd4 = jax.jit(functools.partial(scse_forward, params=params,
                                     io_dtype=jnp.bfloat16))
    out4 = jax.block_until_ready(fwd4(x1))
    assert out4.dtype == jnp.bfloat16
    ref4 = scse_reference(x1.astype(jnp.bfloat16).astype(jnp.float32), params)
    assert bool(jnp.allclose(out4.astype(jnp.float32), ref4, rtol=5e-2, atol=5e-2))

    print("KERNEL_OK")
</pallas_src>

<mosaic_0001>
module attributes {stable_mosaic.version = 11 : i64} {
  func.func @_scse_fused_kernel(%arg0: i32, %arg1: memref<1x64x256xf32, #tpu.memory_space<vmem>>, %arg2: memref<64x4xf32, #tpu.memory_space<vmem>>, %arg3: memref<1x4xf32, #tpu.memory_space<vmem>>, %arg4: memref<64x4xf32, #tpu.memory_space<vmem>>, %arg5: memref<64x1xf32, #tpu.memory_space<vmem>>, %arg6: memref<64x1xf32, #tpu.memory_space<vmem>>, %arg7: memref<1x1xf32, #tpu.memory_space<vmem>>, %arg8: memref<1x64x256xf32, #tpu.memory_space<vmem>>) attributes {dimension_semantics = [#tpu.dimension_semantics<parallel>], iteration_bounds = array<i64: 2>, scalar_prefetch = 0 : i64, scratch_operands = 0 : i64, tpu.core_type = #tpu.core_type<tc>, window_params = [{transform_indices = @transform_0, window_bounds = array<i64: 1, 64, 256>}, {pipeline_mode = #tpu.pipeline_mode<synchronous>, transform_indices = @transform_1, window_bounds = array<i64: 64, 4>}, {pipeline_mode = #tpu.pipeline_mode<synchronous>, transform_indices = @transform_2, window_bounds = array<i64: 1, 4>}, {pipeline_mode = #tpu.pipeline_mode<synchronous>, transform_indices = @transform_3, window_bounds = array<i64: 64, 4>}, {pipeline_mode = #tpu.pipeline_mode<synchronous>, transform_indices = @transform_4, window_bounds = array<i64: 64, 1>}, {pipeline_mode = #tpu.pipeline_mode<synchronous>, transform_indices = @transform_5, window_bounds = array<i64: 64, 1>}, {pipeline_mode = #tpu.pipeline_mode<synchronous>, transform_indices = @transform_6, window_bounds = array<i64: 1, 1>}, {transform_indices = @transform_7, window_bounds = array<i64: 1, 64, 256>}]} {
    %c0 = arith.constant 0 : index
    %c0_0 = arith.constant 0 : index
    %c0_1 = arith.constant 0 : index
    %0 = vector.load %arg1[%c0, %c0_0, %c0_1] : memref<1x64x256xf32, #tpu.memory_space<vmem>>, vector<1x64x256xf32>
    %cst = arith.constant dense<0.000000e+00> : vector<1x64xf32>
    %1 = vector.multi_reduction <add>, %0, %cst [2] : vector<1x64x256xf32> to vector<1x64xf32>
    %2 = vector.shape_cast %1 : vector<1x64xf32> to vector<1x64x1xf32>
    %cst_2 = arith.constant 3.906250e-03 : f32
    %3 = vector.broadcast %cst_2 : f32 to vector<1x64x1xf32>
    %4 = arith.mulf %2, %3 : vector<1x64x1xf32>
    %c0_3 = arith.constant 0 : index
    %c0_4 = arith.constant 0 : index
    %5 = vector.load %arg2[%c0_3, %c0_4] : memref<64x4xf32, #tpu.memory_space<vmem>>, vector<64x4xf32>
    %6 = vector.shape_cast %5 : vector<64x4xf32> to vector<1x64x4xf32>
    %7 = vector.broadcast %4 : vector<1x64x1xf32> to vector<1x64x4xf32>
    %8 = arith.mulf %6, %7 : vector<1x64x4xf32>
    %cst_5 = arith.constant dense<0.000000e+00> : vector<1x4xf32>
    %9 = vector.multi_reduction <add>, %8, %cst_5 [1] : vector<1x64x4xf32> to vector<1x4xf32>
    %10 = vector.shape_cast %9 : vector<1x4xf32> to vector<1x1x4xf32>
    %c0_6 = arith.constant 0 : index
    %c0_7 = arith.constant 0 : index
    %11 = vector.load %arg3[%c0_6, %c0_7] : memref<1x4xf32, #tpu.memory_space<vmem>>, vector<1x4xf32>
    %12 = vector.shape_cast %11 : vector<1x4xf32> to vector<1x1x4xf32>
    %13 = arith.addf %10, %12 : vector<1x1x4xf32>
    %cst_8 = arith.constant 0.000000e+00 : f32
    %14 = vector.broadcast %cst_8 : f32 to vector<1x1x4xf32>
    %15 = arith.maximumf %13, %14 : vector<1x1x4xf32>
    %c0_9 = arith.constant 0 : index
    %c0_10 = arith.constant 0 : index
    %16 = vector.load %arg4[%c0_9, %c0_10] : memref<64x4xf32, #tpu.memory_space<vmem>>, vector<64x4xf32>
    %17 = vector.shape_cast %16 : vector<64x4xf32> to vector<1x64x4xf32>
    %18 = vector.broadcast %15 : vector<1x1x4xf32> to vector<1x64x4xf32>
    %19 = arith.mulf %17, %18 : vector<1x64x4xf32>
    %cst_11 = arith.constant dense<0.000000e+00> : vector<1x64xf32>
    %20 = vector.multi_reduction <add>, %19, %cst_11 [2] : vector<1x64x4xf32> to vector<1x64xf32>
    %21 = vector.shape_cast %20 : vector<1x64xf32> to vector<1x64x1xf32>
    %c0_12 = arith.constant 0 : index
    %c0_13 = arith.constant 0 : index
    %22 = vector.load %arg5[%c0_12, %c0_13] : memref<64x1xf32, #tpu.memory_space<vmem>>, vector<64x1xf32>
    %23 = vector.shape_cast %22 : vector<64x1xf32> to vector<1x64x1xf32>
    %24 = arith.addf %21, %23 : vector<1x64x1xf32>
    %25 = arith.negf %24 : vector<1x64x1xf32>
    %26 = math.exp %25 : vector<1x64x1xf32>
    %cst_14 = arith.constant 1.000000e+00 : f32
    %27 = vector.broadcast %cst_14 : f32 to vector<1x64x1xf32>
    %28 = arith.addf %27, %26 : vector<1x64x1xf32>
    %29 = arith.divf %27, %28 : vector<1x64x1xf32>
    %c0_15 = arith.constant 0 : index
    %c0_16 = arith.constant 0 : index
    %30 = vector.load %arg6[%c0_15, %c0_16] : memref<64x1xf32, #tpu.memory_space<vmem>>, vector<64x1xf32>
    %31 = vector.shape_cast %30 : vector<64x1xf32> to vector<1x64x1xf32>
    %32 = vector.broadcast %31 : vector<1x64x1xf32> to vector<1x64x256xf32>
    %33 = arith.mulf %0, %32 : vector<1x64x256xf32>
    %cst_17 = arith.constant dense<0.000000e+00> : vector<1x256xf32>
    %34 = vector.multi_reduction <add>, %33, %cst_17 [1] : vector<1x64x256xf32> to vector<1x256xf32>
    %35 = vector.shape_cast %34 : vector<1x256xf32> to vector<1x1x256xf32>
    %c0_18 = arith.constant 0 : index
    %c0_19 = arith.constant 0 : index
    %36 = vector.load %arg7[%c0_18, %c0_19] : memref<1x1xf32, #tpu.memory_space<vmem>>, vector<1x1xf32>
    %37 = vector.shape_cast %36 : vector<1x1xf32> to vector<1x1x1xf32>
    %38 = vector.broadcast %37 : vector<1x1x1xf32> to vector<1x1x256xf32>
    %39 = arith.addf %35, %38 : vector<1x1x256xf32>
    %40 = arith.negf %39 : vector<1x1x256xf32>
    %41 = math.exp %40 : vector<1x1x256xf32>
    %cst_20 = arith.constant 1.000000e+00 : f32
    %42 = vector.broadcast %cst_20 : f32 to vector<1x1x256xf32>
    %43 = arith.addf %42, %41 : vector<1x1x256xf32>
    %44 = arith.divf %42, %43 : vector<1x1x256xf32>
    %45 = vector.broadcast %29 : vector<1x64x1xf32> to vector<1x64x256xf32>
    %46 = vector.broadcast %44 : vector<1x1x256xf32> to vector<1x64x256xf32>
    %47 = arith.addf %45, %46 : vector<1x64x256xf32>
    %48 = arith.mulf %0, %47 : vector<1x64x256xf32>
    %c0_21 = arith.constant 0 : index
    %c0_22 = arith.constant 0 : index
    %c0_23 = arith.constant 0 : index
    %49 = vector.load %arg8[%c0_21, %c0_22, %c0_23] : memref<1x64x256xf32, #tpu.memory_space<vmem>>, vector<1x64x256xf32>
    tpu.vector_store %arg8[%c0_21, %c0_22, %c0_23], %48 {strides = array<i32>} : memref<1x64x256xf32, #tpu.memory_space<vmem>>, vector<1x64x256xf32>,
    return
  }
  func.func @transform_0(%arg0: i32) -> (i32, i32, i32) {
    %c0_i32 = arith.constant 0 : i32
    %c0_i32_0 = arith.constant 0 : i32
    %c0_i32_1 = arith.constant 0 : i32
    return %arg0, %c0_i32, %c0_i32_0 : i32, i32, i32
  }
  func.func @transform_1(%arg0: i32) -> (i32, i32) {
    %c0_i32 = arith.constant 0 : i32
    %c0_i32_0 = arith.constant 0 : i32
    %c0_i32_1 = arith.constant 0 : i32
    return %c0_i32, %c0_i32_0 : i32, i32
  }
  func.func @transform_2(%arg0: i32) -> (i32, i32) {
    %c0_i32 = arith.constant 0 : i32
    %c0_i32_0 = arith.constant 0 : i32
    %c0_i32_1 = arith.constant 0 : i32
    return %c0_i32, %c0_i32_0 : i32, i32
  }
  func.func @transform_3(%arg0: i32) -> (i32, i32) {
    %c0_i32 = arith.constant 0 : i32
    %c0_i32_0 = arith.constant 0 : i32
    %c0_i32_1 = arith.constant 0 : i32
    return %c0_i32, %c0_i32_0 : i32, i32
  }
  func.func @transform_4(%arg0: i32) -> (i32, i32) {
    %c0_i32 = arith.constant 0 : i32
    %c0_i32_0 = arith.constant 0 : i32
    %c0_i32_1 = arith.constant 0 : i32
    return %c0_i32, %c0_i32_0 : i32, i32
  }
  func.func @transform_5(%arg0: i32) -> (i32, i32) {
    %c0_i32 = arith.constant 0 : i32
    %c0_i32_0 = arith.constant 0 : i32
    %c0_i32_1 = arith.constant 0 : i32
    return %c0_i32, %c0_i32_0 : i32, i32
  }
  func.func @transform_6(%arg0: i32) -> (i32, i32) {
    %c0_i32 = arith.constant 0 : i32
    %c0_i32_0 = arith.constant 0 : i32
    %c0_i32_1 = arith.constant 0 : i32
    return %c0_i32, %c0_i32_0 : i32, i32
  }
  func.func @transform_7(%arg0: i32) -> (i32, i32, i32) {
    %c0_i32 = arith.constant 0 : i32
    %c0_i32_0 = arith.constant 0 : i32
    %c0_i32_1 = arith.constant 0 : i32
    return %arg0, %c0_i32, %c0_i32_0 : i32, i32, i32
  }
}

</mosaic_0001>

<llo_original>
// kernel: scse_forward.1
$region0: #{scse_forward.1}
  #allocation0 [shape = 'u32[]', space=smem, size = 0x4, offset = 0x4, fixed_abs, tag = 'smem constant byte address 0x4 - core index']
  #allocation1 [shape = 'u32[144,128]{1,0:T(1,128)}', space=vmem, size = 0x12000, scoped, tag = 'internal scratch']
  #allocation2 [shape = 'f32[1,1]{1,0:T(1,128)S(1)}', space=vmem, size = 0x200, scoped, tag = 'scoped memory for scse_forward.1']
  %s0 = inlined_call_operand.vmem [shape: f32[2,64,256], index: 0, kind: input, shape index: {}, may-alias: {0,7}]
  %s1 = inlined_call_operand.vmem [shape: f32[64,4], index: 1, kind: input, shape index: {}]
  %s2 = inlined_call_operand.vmem [shape: f32[1,4], index: 2, kind: input, shape index: {}]
  %s3 = inlined_call_operand.vmem [shape: f32[64,4], index: 3, kind: input, shape index: {}]
  %s4 = inlined_call_operand.vmem [shape: f32[64,1], index: 4, kind: input, shape index: {}]
  %s5 = inlined_call_operand.vmem [shape: f32[64,1], index: 5, kind: input, shape index: {}]
  %s6 = inlined_call_operand.<no memory space> [shape: f32[1,1], index: 6, kind: input, shape index: {}]
  %s7 = inlined_call_operand.vmem [shape: f32[2,64,256], index: 7, kind: output, shape index: {}, may-alias: {0,7}]
  %s8 = sld [smem:[#allocation0]]
  $region61: #{scse_forward.1} parent=0
    _
  %s10 = ssub.s32 1, %s8
  %s11 = scalar_select 0, %s10, %s8
  %v12 = vstv %s6
  %13 = vst [vmem:[#allocation2] sm:$0x1] %v12
  loop: start=0, step=1, limit=4
  $region2: #{scse_forward.1} parent=0 // loop_pre_header
    _
  $region3: #{scse_forward.1} parent=0 // loop_header
    %s15 = sphi 0, %s19
    %p16 = scmp.ge.s32.totalorder %s15, 4
    %s25 = sphi 0, %s27
    %s28 = sphi 0, %s25
    %s29 = sphi 0, %s28
    %s45 = sphi 0, %s29
    %s49 = sphi 0, %s49
    %s51 = sphi 0, %s49
    %s52 = sphi 0, %s51
    %s66 = sphi 0, %s52
    %s70 = sphi 0, %s70
    %s72 = sphi 0, %s70
    %s73 = sphi 0, %s72
    %s87 = sphi 0, %s73
    %s91 = sphi 0, %s91
    %s93 = sphi 0, %s91
    %s94 = sphi 0, %s93
    %s108 = sphi 0, %s94
    %s112 = sphi 0, %s112
    %s114 = sphi 0, %s112
    %s115 = sphi 0, %s114
    %s129 = sphi 0, %s115
    %s133 = sphi 0, %s133
    %s135 = sphi 0, %s133
    %s136 = sphi 0, %s135
    %s150 = sphi 0, %s136
    %s154 = sphi 0, %s154
    %s156 = sphi 0, %s154
    %s157 = sphi 0, %s156
    %s171 = sphi 0, %s157
    %s177 = sphi 0, %s179
    %s180 = sphi 0, %s177
    %s181 = sphi 0, %s180
    %s197 = sphi 0, %s181
  $region4: #{scse_forward.1} parent=0 // loop_header_branch
    %18 = sbr.rel (%p16) target = $region8
  $region5: #{scse_forward.1} parent=0 // loop_body
    %s20 = ssub.s32 %s15, 1
    %s21 = ssub.s32 %s15, 2
    %s22 = sadd.s32 %s15, 1
    %s23 = ssub.s32 %s15, %s22
    %p24 = scmp.eq.s32.totalorder %s23, 0
    %s26 = sadd.s32 %s25, 1
    %s27 = scalar_select %p24, %s25, %s26
    %p30 = pneg %p24
    %p31 = scmp.eq.s32.totalorder %s15, 1
    %p32 = por %p30, %p31
    %p33 = scmp.ne.s32.totalorder %s25, %s28
    %p34 = scmp.eq.s32.totalorder %s15, 0
    %p35 = por %p33, %p34
    %p36 = scmp.ne.s32.totalorder %s25, %s28
    %p37 = scmp.eq.s32.totalorder %s20, 1
    %p38 = por %p36, %p37
    %p39 = scmp.ne.s32.totalorder %s28, %s29
    %p40 = scmp.eq.s32.totalorder %s20, 0
    %p41 = por %p39, %p40
    %p42 = scmp.ne.s32.totalorder %s28, %s29
    %p43 = scmp.eq.s32.totalorder %s21, 1
    %p44 = por %p42, %p43
    %p46 = scmp.ne.s32.totalorder %s29, %s45
    %p47 = scmp.eq.s32.totalorder %s21, 0
    %p48 = por %p46, %p47
    %s50 = sadd.s32 %s49, 1
    %p53 = scmp.eq.s32.totalorder %s15, 1
    %p54 = scmp.ne.s32.totalorder %s49, %s51
    %p55 = scmp.eq.s32.totalorder %s15, 0
    %p56 = por %p54, %p55
    %p57 = scmp.ne.s32.totalorder %s49, %s51
    %p58 = scmp.eq.s32.totalorder %s20, 1
    %p59 = por %p57, %p58
    %p60 = scmp.ne.s32.totalorder %s51, %s52
    %p61 = scmp.eq.s32.totalorder %s20, 0
    %p62 = por %p60, %p61
    %p63 = scmp.ne.s32.totalorder %s51, %s52
    %p64 = scmp.eq.s32.totalorder %s21, 1
    %p65 = por %p63, %p64
    %p67 = scmp.ne.s32.totalorder %s52, %s66
    %p68 = scmp.eq.s32.totalorder %s21, 0
    %p69 = por %p67, %p68
    %s71 = sadd.s32 %s70, 1
    %p74 = scmp.eq.s32.totalorder %s15, 1
    %p75 = scmp.ne.s32.totalorder %s70, %s72
    %p76 = scmp.eq.s32.totalorder %s15, 0
    %p77 = por %p75, %p76
    %p78 = scmp.ne.s32.totalorder %s70, %s72
    %p79 = scmp.eq.s32.totalorder %s20, 1
    %p80 = por %p78, %p79
    %p81 = scmp.ne.s32.totalorder %s72, %s73
    %p82 = scmp.eq.s32.totalorder %s20, 0
    %p83 = por %p81, %p82
    %p84 = scmp.ne.s32.totalorder %s72, %s73
    %p85 = scmp.eq.s32.totalorder %s21, 1
    %p86 = por %p84, %p85
    %p88 = scmp.ne.s32.totalorder %s73, %s87
    %p89 = scmp.eq.s32.totalorder %s21, 0
    %p90 = por %p88, %p89
    %s92 = sadd.s32 %s91, 1
    %p95 = scmp.eq.s32.totalorder %s15, 1
    %p96 = scmp.ne.s32.totalorder %s91, %s93
    %p97 = scmp.eq.s32.totalorder %s15, 0
    %p98 = por %p96, %p97
    %p99 = scmp.ne.s32.totalorder %s91, %s93
    %p100 = scmp.eq.s32.totalorder %s20, 1
    %p101 = por %p99, %p100
    %p102 = scmp.ne.s32.totalorder %s93, %s94
    %p103 = scmp.eq.s32.totalorder %s20, 0
    %p104 = por %p102, %p103
    %p105 = scmp.ne.s32.totalorder %s93, %s94
    %p106 = scmp.eq.s32.totalorder %s21, 1
    %p107 = por %p105, %p106
    %p109 = scmp.ne.s32.totalorder %s94, %s108
    %p110 = scmp.eq.s32.totalorder %s21, 0
    %p111 = por %p109, %p110
    %s113 = sadd.s32 %s112, 1
    %p116 = scmp.eq.s32.totalorder %s15, 1
    %p117 = scmp.ne.s32.totalorder %s112, %s114
    %p118 = scmp.eq.s32.totalorder %s15, 0
    %p119 = por %p117, %p118
    %p120 = scmp.ne.s32.totalorder %s112, %s114
    %p121 = scmp.eq.s32.totalorder %s20, 1
    %p122 = por %p120, %p121
    %p123 = scmp.ne.s32.totalorder %s114, %s115
    %p124 = scmp.eq.s32.totalorder %s20, 0
    %p125 = por %p123, %p124
    %p126 = scmp.ne.s32.totalorder %s114, %s115
    %p127 = scmp.eq.s32.totalorder %s21, 1
    %p128 = por %p126, %p127
    %p130 = scmp.ne.s32.totalorder %s115, %s129
    %p131 = scmp.eq.s32.totalorder %s21, 0
    %p132 = por %p130, %p131
    %s134 = sadd.s32 %s133, 1
    %p137 = scmp.eq.s32.totalorder %s15, 1
    %p138 = scmp.ne.s32.totalorder %s133, %s135
    %p139 = scmp.eq.s32.totalorder %s15, 0
    %p140 = por %p138, %p139
    %p141 = scmp.ne.s32.totalorder %s133, %s135
    %p142 = scmp.eq.s32.totalorder %s20, 1
    %p143 = por %p141, %p142
    %p144 = scmp.ne.s32.totalorder %s135, %s136
    %p145 = scmp.eq.s32.totalorder %s20, 0
    %p146 = por %p144, %p145
    %p147 = scmp.ne.s32.totalorder %s135, %s136
    %p148 = scmp.eq.s32.totalorder %s21, 1
    %p149 = por %p147, %p148
    %p151 = scmp.ne.s32.totalorder %s136, %s150
    %p152 = scmp.eq.s32.totalorder %s21, 0
    %p153 = por %p151, %p152
    %s155 = sadd.s32 %s154, 1
    %p158 = scmp.eq.s32.totalorder %s15, 1
    %p159 = scmp.ne.s32.totalorder %s154, %s156
    %p160 = scmp.eq.s32.totalorder %s15, 0
    %p161 = por %p159, %p160
    %p162 = scmp.ne.s32.totalorder %s154, %s156
    %p163 = scmp.eq.s32.totalorder %s20, 1
    %p164 = por %p162, %p163
    %p165 = scmp.ne.s32.totalorder %s156, %s157
    %p166 = scmp.eq.s32.totalorder %s20, 0
    %p167 = por %p165, %p166
    %p168 = scmp.ne.s32.totalorder %s156, %s157
    %p169 = scmp.eq.s32.totalorder %s21, 1
    %p170 = por %p168, %p169
    %p172 = scmp.ne.s32.totalorder %s157, %s171
    %p173 = scmp.eq.s32.totalorder %s21, 0
    %p174 = por %p172, %p173
    %s175 = ssub.s32 %s15, %s22
    %p176 = scmp.eq.s32.totalorder %s175, 0
    %s178 = sadd.s32 %s177, 1
    %s179 = scalar_select %p176, %s177, %s178
    %p182 = pneg %p176
    %p183 = scmp.eq.s32.totalorder %s15, 1
    %p184 = por %p182, %p183
    %p185 = scmp.ne.s32.totalorder %s177, %s180
    %p186 = scmp.eq.s32.totalorder %s15, 0
    %p187 = por %p185, %p186
    %p188 = scmp.ne.s32.totalorder %s177, %s180
    %p189 = scmp.eq.s32.totalorder %s20, 1
    %p190 = por %p188, %p189
    %p191 = scmp.ne.s32.totalorder %s180, %s181
    %p192 = scmp.eq.s32.totalorder %s20, 0
    %p193 = por %p191, %p192
    %p194 = scmp.ne.s32.totalorder %s180, %s181
    %p195 = scmp.eq.s32.totalorder %s21, 1
    %p196 = por %p194, %p195
    %p198 = scmp.ne.s32.totalorder %s181, %s197
    %p199 = scmp.eq.s32.totalorder %s21, 0
    %p200 = por %p198, %p199
    %p201 = scmp.le.s32.totalorder 1, %s15
    %p202 = scmp.lt.s32.totalorder %s15, 3
    %p203 = pnand %p201, %p202
    %p204 = pneg %p203
    // Predicated region
    $region9: #{scse_forward.1} parent=5 // pred_check
      _
    $region10: #{scse_forward.1} parent=5 // pred_check_branch
      %206 = sbr.rel (%p203) target = $region12
    $region11: #{scse_forward.1} parent=5 // pred_region
      %s207 = ssub.s32 %s15, 1
      // Predicated region
      $region13: #{scse_forward.1} parent=11 // pred_check
        %p208 = pneg %p62
      $region14: #{scse_forward.1} parent=11 // pred_check_branch
        %210 = sbr.rel (%p208) target = $region16
      $region15: #{scse_forward.1} parent=11 // pred_region
        _
      $region16: #{scse_forward.1} parent=11 // pred_fallthru
        _
      // Predicated region
      $region17: #{scse_forward.1} parent=11 // pred_check
        %p211 = pneg %p83
      $region18: #{scse_forward.1} parent=11 // pred_check_branch
        %213 = sbr.rel (%p211) target = $region20
      $region19: #{scse_forward.1} parent=11 // pred_region
        _
      $region20: #{scse_forward.1} parent=11 // pred_fallthru
        _
      // Predicated region
      $region21: #{scse_forward.1} parent=11 // pred_check
        %p214 = pneg %p104
      $region22: #{scse_forward.1} parent=11 // pred_check_branch
        %216 = sbr.rel (%p214) target = $region24
      $region23: #{scse_forward.1} parent=11 // pred_region
        _
      $region24: #{scse_forward.1} parent=11 // pred_fallthru
        _
      // Predicated region
      $region25: #{scse_forward.1} parent=11 // pred_check
        %p217 = pneg %p125
      $region26: #{scse_forward.1} parent=11 // pred_check_branch
        %219 = sbr.rel (%p217) target = $region28
      $region27: #{scse_forward.1} parent=11 // pred_region
        _
      $region28: #{scse_forward.1} parent=11 // pred_fallthru
        _
      // Predicated region
      $region29: #{scse_forward.1} parent=11 // pred_check
        %p220 = pneg %p146
      $region30: #{scse_forward.1} parent=11 // pred_check_branch
        %222 = sbr.rel (%p220) target = $region32
      $region31: #{scse_forward.1} parent=11 // pred_region
        _
      $region32: #{scse_forward.1} parent=11 // pred_fallthru
        _
      // Predicated region
      $region33: #{scse_forward.1} parent=11 // pred_check
        %p223 = pneg %p167
      $region34: #{scse_forward.1} parent=11 // pred_check_branch
        %225 = sbr.rel (%p223) target = $region36
      $region35: #{scse_forward.1} parent=11 // pred_region
        _
      $region36: #{scse_forward.1} parent=11 // pred_fallthru
        _
    $region12: #{scse_forward.1} parent=5 // pred_fallthru
      _
    %p226 = scmp.lt.s32.totalorder %s15, 2
    // Predicated region
    $region37: #{scse_forward.1} parent=5 // pred_check
      %p227 = pneg %p226
    $region38: #{scse_forward.1} parent=5 // pred_check_branch
      %229 = sbr.rel (%p227) target = $region40
    $region39: #{scse_forward.1} parent=5 // pred_region
      // Predicated region
      $region41: #{scse_forward.1} parent=39 // pred_check
        %p230 = pneg %p35
      $region42: #{scse_forward.1} parent=39 // pred_check_branch
        %232 = sbr.rel (%p230) target = $region44
      $region43: #{scse_forward.1} parent=39 // pred_region
        %p233 = scmp.lt.s32.totalorder %s15, 1
        %s234 = scalar_select %p233, %s15, 1
        %s235 = smul.addr %s234, 16
        %s236 = smul.addr %s235, 8
        %s237 = scalar_lea.vmem %s0, %s236
      $region44: #{scse_forward.1} parent=39 // pred_fallthru
        _
    $region40: #{scse_forward.1} parent=5 // pred_fallthru
      _
    %p238 = scmp.le.s32.totalorder 1, %s15
    %p239 = scmp.lt.s32.totalorder %s15, 3
    %p240 = pnand %p238, %p239
    %p241 = pneg %p240
    // Predicated region
    $region45: #{scse_forward.1} parent=5 // pred_check
      _
    $region46: #{scse_forward.1} parent=5 // pred_check_branch
      %243 = sbr.rel (%p240) target = $region48
    $region47: #{scse_forward.1} parent=5 // pred_region
      %s244 = ssub.s32 %s15, 1
      %p245 = scmp.lt.s32.totalorder %s20, 1
      %s246 = scalar_select %p245, %s20, 1
      %s247 = smul.addr %s246, 16
      %s248 = smul.addr %s247, 8
      %s249 = scalar_lea.vmem %s0, %s248
      %p250 = pneg %p41
      %p251 = pneg %p38
      %p252 = pneg %p62
      %p253 = pneg %p59
      %p254 = pneg %p83
      %p255 = pneg %p80
      %p256 = pneg %p104
      %p257 = pneg %p101
      %p258 = pneg %p125
      %p259 = pneg %p122
      %p260 = pneg %p146
      %p261 = pneg %p143
      %p262 = pneg %p167
      %p263 = pneg %p164
      %p264 = pneg %p193
      %p265 = pneg %p190
      %p266 = scmp.lt.s32.totalorder %s20, 1
      %s267 = scalar_select %p266, %s20, 1
      %s268 = smul.addr %s267, 16
      %s269 = smul.addr %s268, 8
      %s270 = scalar_lea.vmem %s7, %s269
      %p271 = scmp.lt.s32.totalorder %s20, 1
      %s272 = scalar_select %p271, %s20, 1
      %s273 = smul.addr %s272, 16
      %s274 = smul.addr %s273, 8
      %s275 = scalar_lea.vmem %s0, %s274
      %p276 = scmp.lt.s32.totalorder %s20, 1
      %s277 = scalar_select %p276, %s20, 1
      %s278 = smul.addr %s277, 16
      %s279 = smul.addr %s278, 8
      %s280 = scalar_lea.vmem %s7, %s279
      %v281 = vld [vmem:[%s275] sm:$0xff]
      %v282 = vld [vmem:[%s275 + $0x8] sm:$0xff]
      %v283 = vld [vmem:[%s275 + $0x10] sm:$0xff]
      %v284 = vld [vmem:[%s275 + $0x18] sm:$0xff]
      %v285 = vld [vmem:[%s275 + $0x20] sm:$0xff]
      %v286 = vld [vmem:[%s275 + $0x28] sm:$0xff]
      %v287 = vld [vmem:[%s275 + $0x30] sm:$0xff]
      %v288 = vld [vmem:[%s275 + $0x38] sm:$0xff]
      %v289 = vld [vmem:[%s275 + $0x40] sm:$0xff]
      %v290 = vld [vmem:[%s275 + $0x48] sm:$0xff]
      %v291 = vld [vmem:[%s275 + $0x50] sm:$0xff]
      %v292 = vld [vmem:[%s275 + $0x58] sm:$0xff]
      %v293 = vld [vmem:[%s275 + $0x60] sm:$0xff]
      %v294 = vld [vmem:[%s275 + $0x68] sm:$0xff]
      %v295 = vld [vmem:[%s275 + $0x70] sm:$0xff]
      %v296 = vld [vmem:[%s275 + $0x78] sm:$0xff]
      %v297 = vadd.f32 %v281, %v282
      %298 = vadd.xlane.f32.xlu0 %v297
      %v299 = vpop.xlane.xlu0 %298
      %v300 = vadd.f32 %v283, %v284
      %301 = vadd.xlane.f32.xlu0 %v300
      %v302 = vpop.xlane.xlu0 %301
      %v303 = vadd.f32 %v285, %v286
      %304 = vadd.xlane.f32.xlu0 %v303
      %v305 = vpop.xlane.xlu0 %304
      %v306 = vadd.f32 %v287, %v288
      %307 = vadd.xlane.f32.xlu0 %v306
      %v308 = vpop.xlane.xlu0 %307
      %v309 = vadd.f32 %v289, %v290
      %310 = vadd.xlane.f32.xlu0 %v309
      %v311 = vpop.xlane.xlu0 %310
      %v312 = vadd.f32 %v291, %v292
      %313 = vadd.xlane.f32.xlu0 %v312
      %v314 = vpop.xlane.xlu0 %313
      %v315 = vadd.f32 %v293, %v294
      %316 = vadd.xlane.f32.xlu0 %v315
      %v317 = vpop.xlane.xlu0 %316
      %v318 = vadd.f32 %v295, %v296
      %319 = vadd.xlane.f32.xlu0 %v318
      %v320 = vpop.xlane.xlu0 %319
      %v321 = vmul.f32 %v299, 0.00390625
      %v322 = vmul.f32 %v302, 0.00390625
      %v323 = vmul.f32 %v305, 0.00390625
      %v324 = vmul.f32 %v308, 0.00390625
      %v325 = vmul.f32 %v311, 0.00390625
      %v326 = vmul.f32 %v314, 0.00390625
      %v327 = vmul.f32 %v317, 0.00390625
      %v328 = vmul.f32 %v320, 0.00390625
      %v329 = vld [vmem:[%s1] sm:$0xff]
      %v330 = vld [vmem:[%s1 + $0x8] sm:$0xff]
      %v331 = vld [vmem:[%s1 + $0x10] sm:$0xff]
      %v332 = vld [vmem:[%s1 + $0x18] sm:$0xff]
      %v333 = vld [vmem:[%s1 + $0x20] sm:$0xff]
      %v334 = vld [vmem:[%s1 + $0x28] sm:$0xff]
      %v335 = vld [vmem:[%s1 + $0x30] sm:$0xff]
      %v336 = vld [vmem:[%s1 + $0x38] sm:$0xff]
      %v337 = vmul.f32 %v329, %v321
      %v338 = vmul.f32 %v330, %v322
      %v339 = vmul.f32 %v331, %v323
      %v340 = vmul.f32 %v332, %v324
      %v341 = vmul.f32 %v333, %v325
      %v342 = vmul.f32 %v334, %v326
      %v343 = vmul.f32 %v335, %v327
      %v344 = vmul.f32 %v336, %v328
      %vm345 = vcmask 31744
      %v346 = vsel %vm345, %v337, 0.0
      %v347 = vsel %vm345, %v338, 0.0
      %v348 = vadd.f32 %v346, %v347
      %v349 = vsel %vm345, %v339, 0.0
      %v350 = vadd.f32 %v348, %v349
      %v351 = vsel %vm345, %v340, 0.0
      %v352 = vadd.f32 %v350, %v351
      %v353 = vsel %vm345, %v341, 0.0
      %v354 = vadd.f32 %v352, %v353
      %v355 = vsel %vm345, %v342, 0.0
      %v356 = vadd.f32 %v354, %v355
      %v357 = vsel %vm345, %v343, 0.0
      %v358 = vadd.f32 %v356, %v357
      %v359 = vsel %vm345, %v344, 0.0
      %v360 = vadd.f32 %v358, %v359
      %v361 = vrot.slane %v360, 4
      %v362 = vadd.f32 %v360, %v361
      %v363 = vrot.slane %v362, 2
      %v364 = vadd.f32 %v362, %v363
      %v365 = vrot.slane %v364, 1
      %v366 = vadd.f32 %v364, %v365
      %v367 = vld [vmem:[%s2] sm:$0x1]
      %v368 = vadd.f32 %v366, %v367
      %v369 = vmax.f32 %v368, 0.0
      %v370 = vld [vmem:[%s3] sm:$0xff]
      %v371 = vld [vmem:[%s3 + $0x8] sm:$0xff]
      %v372 = vld [vmem:[%s3 + $0x10] sm:$0xff]
      %v373 = vld [vmem:[%s3 + $0x18] sm:$0xff]
      %v374 = vld [vmem:[%s3 + $0x20] sm:$0xff]
      %v375 = vld [vmem:[%s3 + $0x28] sm:$0xff]
      %v376 = vld [vmem:[%s3 + $0x30] sm:$0xff]
      %v377 = vld [vmem:[%s3 + $0x38] sm:$0xff]
      %v378 = vlaneseq
      %v379 = vshrl.u32 %v378, 7
      %v380 = vsub.s32 0, %v379
      %v381 = vrot.slane %v369, %v380
      %v382 = vmul.f32 %v370, %v381
      %v383 = vmul.f32 %v371, %v381
      %v384 = vmul.f32 %v372, %v381
      %v385 = vmul.f32 %v373, %v381
      %v386 = vmul.f32 %v374, %v381
      %v387 = vmul.f32 %v375, %v381
      %v388 = vmul.f32 %v376, %v381
      %v389 = vmul.f32 %v377, %v381
      %v390 = vsel %vm345, %v382, 0.0
      %391 = vadd.xlane.f32.xlu0 %v390
      %v392 = vpop.xlane.xlu0 %391
      %v393 = vsel %vm345, %v383, 0.0
      %394 = vadd.xlane.f32.xlu0 %v393
      %v395 = vpop.xlane.xlu0 %394
      %v396 = vsel %vm345, %v384, 0.0
      %397 = vadd.xlane.f32.xlu0 %v396
      %v398 = vpop.xlane.xlu0 %397
      %v399 = vsel %vm345, %v385, 0.0
      %400 = vadd.xlane.f32.xlu0 %v399
      %v401 = vpop.xlane.xlu0 %400
      %v402 = vsel %vm345, %v386, 0.0
      %403 = vadd.xlane.f32.xlu0 %v402
      %v404 = vpop.xlane.xlu0 %403
      %v405 = vsel %vm345, %v387, 0.0
      %406 = vadd.xlane.f32.xlu0 %v405
      %v407 = vpop.xlane.xlu0 %406
      %v408 = vsel %vm345, %v388, 0.0
      %409 = vadd.xlane.f32.xlu0 %v408
      %v410 = vpop.xlane.xlu0 %409
      %v411 = vsel %vm345, %v389, 0.0
      %412 = vadd.xlane.f32.xlu0 %v411
      %v413 = vpop.xlane.xlu0 %412
      %v414 = vld [vmem:[%s4] sm:$0xff]
      %v415 = vld [vmem:[%s4 + $0x8] sm:$0xff]
      %v416 = vld [vmem:[%s4 + $0x10] sm:$0xff]
      %v417 = vld [vmem:[%s4 + $0x18] sm:$0xff]
      %v418 = vld [vmem:[%s4 + $0x20] sm:$0xff]
      %v419 = vld [vmem:[%s4 + $0x28] sm:$0xff]
      %v420 = vld [vmem:[%s4 + $0x30] sm:$0xff]
      %v421 = vld [vmem:[%s4 + $0x38] sm:$0xff]
      %v422 = vadd.f32 %v392, %v414
      %v423 = vadd.f32 %v395, %v415
      %v424 = vadd.f32 %v398, %v416
      %v425 = vadd.f32 %v401, %v417
      %v426 = vadd.f32 %v404, %v418
      %v427 = vadd.f32 %v407, %v419
      %v428 = vadd.f32 %v410, %v420
      %v429 = vadd.f32 %v413, %v421
      %v430 = vxor.u32 %v422, 2147483648
      %v431 = vxor.u32 %v423, 2147483648
      %v432 = vxor.u32 %v424, 2147483648
      %v433 = vxor.u32 %v425, 2147483648
      %v434 = vxor.u32 %v426, 2147483648
      %v435 = vxor.u32 %v427, 2147483648
      %v436 = vxor.u32 %v428, 2147483648
      %v437 = vxor.u32 %v429, 2147483648
      %v438 = vmul.f32 %v430, 1.442695
      %v439 = vpow.pop %v438
      %v440 = vmul.f32 %v431, 1.442695
      %v441 = vpow.pop %v440
      %v442 = vmul.f32 %v432, 1.442695
      %v443 = vpow.pop %v442
      %v444 = vmul.f32 %v433, 1.442695
      %v445 = vpow.pop %v444
      %v446 = vmul.f32 %v434, 1.442695
      %v447 = vpow.pop %v446
      %v448 = vmul.f32 %v435, 1.442695
      %v449 = vpow.pop %v448
      %v450 = vmul.f32 %v436, 1.442695
      %v451 = vpow.pop %v450
      %v452 = vmul.f32 %v437, 1.442695
      %v453 = vpow.pop %v452
      %v454 = vadd.f32 %v439, 1.0
      %v455 = vadd.f32 %v441, 1.0
      %v456 = vadd.f32 %v443, 1.0
      %v457 = vadd.f32 %v445, 1.0
      %v458 = vadd.f32 %v447, 1.0
      %v459 = vadd.f32 %v449, 1.0
      %v460 = vadd.f32 %v451, 1.0
      %v461 = vadd.f32 %v453, 1.0
      %v462 = vrcp.pop %v454
      %v463 = vmul.f32 1.0, %v462
      %v464 = vrcp.pop %v455
      %v465 = vmul.f32 1.0, %v464
      %v466 = vrcp.pop %v456
      %v467 = vmul.f32 1.0, %v466
      %v468 = vrcp.pop %v457
      %v469 = vmul.f32 1.0, %v468
      %v470 = vrcp.pop %v458
      %v471 = vmul.f32 1.0, %v470
      %v472 = vrcp.pop %v459
      %v473 = vmul.f32 1.0, %v472
      %v474 = vrcp.pop %v460
      %v475 = vmul.f32 1.0, %v474
      %v476 = vrcp.pop %v461
      %v477 = vmul.f32 1.0, %v476
      %v478 = vld [vmem:[%s5] sm:$0xff]
      %v479 = vld [vmem:[%s5 + $0x8] sm:$0xff]
      %v480 = vld [vmem:[%s5 + $0x10] sm:$0xff]
      %v481 = vld [vmem:[%s5 + $0x18] sm:$0xff]
      %v482 = vld [vmem:[%s5 + $0x20] sm:$0xff]
      %v483 = vld [vmem:[%s5 + $0x28] sm:$0xff]
      %v484 = vld [vmem:[%s5 + $0x30] sm:$0xff]
      %v485 = vld [vmem:[%s5 + $0x38] sm:$0xff]
      %487 = vset.pattern.permute.xlu0 0
      %488 = vperm.xlu0 %487, %v478
      %v489 = vpop.permute.xlu0 %488
      %492 = vset.pattern.permute.xlu0 0
      %493 = vperm.xlu0 %492, %v479
      %v494 = vpop.permute.xlu0 %493
      %497 = vset.pattern.permute.xlu0 0
      %498 = vperm.xlu0 %497, %v480
      %v499 = vpop.permute.xlu0 %498
      %502 = vset.pattern.permute.xlu0 0
      %503 = vperm.xlu0 %502, %v481
      %v504 = vpop.permute.xlu0 %503
      %507 = vset.pattern.permute.xlu0 0
      %508 = vperm.xlu0 %507, %v482
      %v509 = vpop.permute.xlu0 %508
      %512 = vset.pattern.permute.xlu0 0
      %513 = vperm.xlu0 %512, %v483
      %v514 = vpop.permute.xlu0 %513
      %517 = vset.pattern.permute.xlu0 0
      %518 = vperm.xlu0 %517, %v484
      %v519 = vpop.permute.xlu0 %518
      %522 = vset.pattern.permute.xlu0 0
      %523 = vperm.xlu0 %522, %v485
      %v524 = vpop.permute.xlu0 %523
      %v526 = vmul.f32 %v281, %v489
      %v527 = vmul.f32 %v282, %v489
      %v528 = vmul.f32 %v283, %v494
      %v529 = vmul.f32 %v284, %v494
      %v530 = vmul.f32 %v285, %v499
      %v531 = vmul.f32 %v286, %v499
      %v532 = vmul.f32 %v287, %v504
      %v533 = vmul.f32 %v288, %v504
      %v534 = vmul.f32 %v289, %v509
      %v535 = vmul.f32 %v290, %v509
      %v536 = vmul.f32 %v291, %v514
      %v537 = vmul.f32 %v292, %v514
      %v538 = vmul.f32 %v293, %v519
      %v539 = vmul.f32 %v294, %v519
      %v540 = vmul.f32 %v295, %v524
      %v541 = vmul.f32 %v296, %v524
      %v542 = vadd.f32 %v526, %v528
      %v543 = vadd.f32 %v542, %v530
      %v544 = vadd.f32 %v543, %v532
      %v545 = vadd.f32 %v544, %v534
      %v546 = vadd.f32 %v545, %v536
      %v547 = vadd.f32 %v546, %v538
      %v548 = vadd.f32 %v547, %v540
      %v549 = vrot.slane %v548, 4
      %v550 = vadd.f32 %v548, %v549
      %v551 = vrot.slane %v550, 2
      %v552 = vadd.f32 %v550, %v551
      %v553 = vrot.slane %v552, 1
      %v554 = vadd.f32 %v552, %v553
      %v555 = vadd.f32 %v527, %v529
      %v556 = vadd.f32 %v555, %v531
      %v557 = vadd.f32 %v556, %v533
      %v558 = vadd.f32 %v557, %v535
      %v559 = vadd.f32 %v558, %v537
      %v560 = vadd.f32 %v559, %v539
      %v561 = vadd.f32 %v560, %v541
      %v562 = vrot.slane %v561, 4
      %v563 = vadd.f32 %v561, %v562
      %v564 = vrot.slane %v563, 2
      %v565 = vadd.f32 %v563, %v564
      %v566 = vrot.slane %v565, 1
      %v567 = vadd.f32 %v565, %v566
      %v568 = vld [vmem:[#allocation2] sm:$0x1]
      %570 = vset.pattern.permute.xlu0 0
      %571 = vperm.xlu0 %570, %v568
      %v572 = vpop.permute.xlu0 %571
      %v574 = vlaneseq
      %v575 = vshrl.u32 %v574, 7
      %v576 = vsub.s32 0, %v575
      %v577 = vrot.slane %v572, %v576
      %v578 = vadd.f32 %v554, %v577
      %v579 = vadd.f32 %v567, %v577
      %v580 = vxor.u32 %v578, 2147483648
      %v581 = vxor.u32 %v579, 2147483648
      %v582 = vmul.f32 %v580, 1.442695
      %v583 = vpow.pop %v582
      %v584 = vmul.f32 %v581, 1.442695
      %v585 = vpow.pop %v584
      %v586 = vadd.f32 %v583, 1.0
      %v587 = vadd.f32 %v585, 1.0
      %v588 = vrcp.pop %v586
      %v589 = vmul.f32 1.0, %v588
      %v590 = vrcp.pop %v587
      %v591 = vmul.f32 1.0, %v590
      %593 = vset.pattern.permute.xlu0 0
      %594 = vperm.xlu0 %593, %v463
      %v595 = vpop.permute.xlu0 %594
      %598 = vset.pattern.permute.xlu0 0
      %599 = vperm.xlu0 %598, %v465
      %v600 = vpop.permute.xlu0 %599
      %603 = vset.pattern.permute.xlu0 0
      %604 = vperm.xlu0 %603, %v467
      %v605 = vpop.permute.xlu0 %604
      %608 = vset.pattern.permute.xlu0 0
      %609 = vperm.xlu0 %608, %v469
      %v610 = vpop.permute.xlu0 %609
      %613 = vset.pattern.permute.xlu0 0
      %614 = vperm.xlu0 %613, %v471
      %v615 = vpop.permute.xlu0 %614
      %618 = vset.pattern.permute.xlu0 0
      %619 = vperm.xlu0 %618, %v473
      %v620 = vpop.permute.xlu0 %619
      %623 = vset.pattern.permute.xlu0 0
      %624 = vperm.xlu0 %623, %v475
      %v625 = vpop.permute.xlu0 %624
      %628 = vset.pattern.permute.xlu0 0
      %629 = vperm.xlu0 %628, %v477
      %v630 = vpop.permute.xlu0 %629
      %v632 = vadd.f32 %v595, %v589
      %v633 = vadd.f32 %v595, %v591
      %v634 = vadd.f32 %v600, %v589
      %v635 = vadd.f32 %v600, %v591
      %v636 = vadd.f32 %v605, %v589
      %v637 = vadd.f32 %v605, %v591
      %v638 = vadd.f32 %v610, %v589
      %v639 = vadd.f32 %v610, %v591
      %v640 = vadd.f32 %v615, %v589
      %v641 = vadd.f32 %v615, %v591
      %v642 = vadd.f32 %v620, %v589
      %v643 = vadd.f32 %v620, %v591
      %v644 = vadd.f32 %v625, %v589
      %v645 = vadd.f32 %v625, %v591
      %v646 = vadd.f32 %v630, %v589
      %v647 = vadd.f32 %v630, %v591
      %v648 = vmul.f32 %v281, %v632
      %v649 = vmul.f32 %v282, %v633
      %v650 = vmul.f32 %v283, %v634
      %v651 = vmul.f32 %v284, %v635
      %v652 = vmul.f32 %v285, %v636
      %v653 = vmul.f32 %v286, %v637
      %v654 = vmul.f32 %v287, %v638
      %v655 = vmul.f32 %v288, %v639
      %v656 = vmul.f32 %v289, %v640
      %v657 = vmul.f32 %v290, %v641
      %v658 = vmul.f32 %v291, %v642
      %v659 = vmul.f32 %v292, %v643
      %v660 = vmul.f32 %v293, %v644
      %v661 = vmul.f32 %v294, %v645
      %v662 = vmul.f32 %v295, %v646
      %v663 = vmul.f32 %v296, %v647
      %664 = vst [vmem:[%s280] sm:$0xff] %v648
      %665 = vst [vmem:[%s280 + $0x8] sm:$0xff] %v649
      %666 = vst [vmem:[%s280 + $0x10] sm:$0xff] %v650
      %667 = vst [vmem:[%s280 + $0x18] sm:$0xff] %v651
      %668 = vst [vmem:[%s280 + $0x20] sm:$0xff] %v652
      %669 = vst [vmem:[%s280 + $0x28] sm:$0xff] %v653
      %670 = vst [vmem:[%s280 + $0x30] sm:$0xff] %v654
      %671 = vst [vmem:[%s280 + $0x38] sm:$0xff] %v655
      %672 = vst [vmem:[%s280 + $0x40] sm:$0xff] %v656
      %673 = vst [vmem:[%s280 + $0x48] sm:$0xff] %v657
      %674 = vst [vmem:[%s280 + $0x50] sm:$0xff] %v658
      %675 = vst [vmem:[%s280 + $0x58] sm:$0xff] %v659
      %676 = vst [vmem:[%s280 + $0x60] sm:$0xff] %v660
      %677 = vst [vmem:[%s280 + $0x68] sm:$0xff] %v661
      %678 = vst [vmem:[%s280 + $0x70] sm:$0xff] %v662
      %679 = vst [vmem:[%s280 + $0x78] sm:$0xff] %v663
      %p680 = scmp.lt.s32.totalorder %s20, 1
      %s681 = scalar_select %p680, %s20, 1
      %s682 = smul.addr %s681, 16
      %s683 = smul.addr %s682, 8
      %s684 = scalar_lea.vmem %s7, %s683
      // Predicated region
      $region49: #{scse_forward.1} parent=47 // pred_check
        %p685 = pneg %p190
      $region50: #{scse_forward.1} parent=47 // pred_check_branch
        %687 = sbr.rel (%p685) target = $region52
      $region51: #{scse_forward.1} parent=47 // pred_region
        _
      $region52: #{scse_forward.1} parent=47 // pred_fallthru
        _
    $region48: #{scse_forward.1} parent=5 // pred_fallthru
      _
    %p688 = scmp.le.s32.totalorder 2, %s15
    // Predicated region
    $region53: #{scse_forward.1} parent=5 // pred_check
      %p689 = pneg %p688
    $region54: #{scse_forward.1} parent=5 // pred_check_branch
      %691 = sbr.rel (%p689) target = $region56
    $region55: #{scse_forward.1} parent=5 // pred_region
      %s692 = ssub.s32 %s15, 2
      // Predicated region
      $region57: #{scse_forward.1} parent=55 // pred_check
        %p693 = pneg %p196
      $region58: #{scse_forward.1} parent=55 // pred_check_branch
        %695 = sbr.rel (%p693) target = $region60
      $region59: #{scse_forward.1} parent=55 // pred_region
        %p696 = scmp.lt.s32.totalorder %s21, 1
        %s697 = scalar_select %p696, %s21, 1
        %s698 = smul.addr %s697, 16
        %s699 = smul.addr %s698, 8
        %s700 = scalar_lea.vmem %s7, %s699
      $region60: #{scse_forward.1} parent=55 // pred_fallthru
        _
    $region56: #{scse_forward.1} parent=5 // pred_fallthru
      _
  $region6: #{scse_forward.1} parent=0 // loop_footer
    %s19 = sadd.s32 1, %s15
  $region7: #{scse_forward.1} parent=0 // loop_footer_branch
    %14 = sbr.rel target = $region3
  $region8: #{scse_forward.1} parent=0 // loop_exit
    _

</llo_original>
